<compile_context>
chip_gen: v6e
topology: v6e:2x2x1
jax: 0.10.0
libtpu: 0.0.40
codegen_flags: <defaults>
</compile_context>

<pallas_src>
import jax
import jax.numpy as jnp
from jax import lax
from jax.experimental import pallas as pl
from jax.experimental.pallas import tpu as pltpu


def text_sentiment_kernel(text_ref, start_ref, end_ref, emb_ref, w_ref, b_ref, out_ref):
    T = text_ref.shape[0]          # total tokens
    BT = start_ref.shape[0]        # bags in this batch tile
    V, D = emb_ref.shape
    cdt = emb_ref.dtype            # bf16 storage dtype; accumulation is f32

    # ---- EmbeddingBag(mode='mean') as two MXU matmuls ----
    # Token one-hot over the vocab: onehot[i, v] = (text[i] == v).
    tok = text_ref[...]                                        # [T, 1] int32 (column layout)
    v_iota = lax.broadcasted_iota(jnp.int32, (T, V), 1)
    onehot = (v_iota == tok).astype(cdt)                       # [T, V]

    # Bag membership: member[b, i] = (start[b] <= i < end[b]).
    pos = lax.broadcasted_iota(jnp.int32, (BT, T), 1)
    starts = start_ref[...]                                    # [BT, 1] int32
    ends = end_ref[...]                                        # [BT, 1] int32
    member = ((pos >= starts) & (pos < ends)).astype(cdt)      # [BT, T]

    # counts[b, v] = #occurrences of token v in bag b (exact small integers -> exact in bf16).
    counts = jnp.dot(member, onehot, preferred_element_type=jnp.float32)        # [BT, V] f32
    sums = jnp.dot(counts.astype(cdt), emb_ref[...],
                   preferred_element_type=jnp.float32)                          # [BT, D] f32

    lens = (ends - starts).astype(jnp.float32)                 # [BT, 1]
    inv = jnp.where(lens > 0, 1.0 / lens, 0.0)                 # empty bag -> zeros (PyTorch)
    means = sums * inv                                         # [BT, D] f32

    # ---- Dropout(p=0.7): identity in eval mode ----

    # ---- fc: out = means @ W^T + b  (W pre-transposed to [D, C]) ----
    logits = jnp.dot(means.astype(w_ref.dtype), w_ref[...],
                     preferred_element_type=jnp.float32) + b_ref[...]
    out_ref[...] = logits.astype(out_ref.dtype)


def text_sentiment_forward(text, offsets, emb_table, fc_w_t, fc_b, *, bag_tile=None):
    (T,) = text.shape
    (B,) = offsets.shape
    V, D = emb_table.shape
    C = fc_w_t.shape[1]

    # 2-D column layouts so the kernel never needs an in-kernel transpose.
    text_col = text.astype(jnp.int32).reshape(T, 1)
    starts = offsets.astype(jnp.int32).reshape(B, 1)
    ends = jnp.concatenate(
        [offsets[1:], jnp.array([T], dtype=offsets.dtype)]).astype(jnp.int32).reshape(B, 1)
    bias = fc_b.reshape(1, C).astype(jnp.float32)

    bt = B if bag_tile is None else min(bag_tile, B)
    grid = (pl.cdiv(B, bt),)

    cost = pl.CostEstimate(
        flops=2 * B * T * V + 2 * B * V * D + 2 * B * D * C,
        transcendentals=0,
        bytes_accessed=(text_col.size * 4 + 2 * B * 4
                        + emb_table.size * emb_table.dtype.itemsize
                        + fc_w_t.size * fc_w_t.dtype.itemsize
                        + bias.size * 4 + B * C * 4),
    )

    return pl.pallas_call(
        text_sentiment_kernel,
        out_shape=jax.ShapeDtypeStruct((B, C), jnp.float32),
        grid_spec=pltpu.PrefetchScalarGridSpec(
            num_scalar_prefetch=0,
            grid=grid,
            in_specs=[
                pl.BlockSpec((T, 1), lambda i: (0, 0)),    # token ids (column)
                pl.BlockSpec((bt, 1), lambda i: (i, 0)),   # bag start offsets
                pl.BlockSpec((bt, 1), lambda i: (i, 0)),   # bag end offsets
                pl.BlockSpec((V, D), lambda i: (0, 0)),    # embedding table (bf16)
                pl.BlockSpec((D, C), lambda i: (0, 0)),    # fc weight, pre-transposed (bf16)
                pl.BlockSpec((1, C), lambda i: (0, 0)),    # fc bias (f32)
            ],
            out_specs=pl.BlockSpec((bt, C), lambda i: (i, 0)),
        ),
        compiler_params=pltpu.CompilerParams(
            dimension_semantics=("parallel",),             # bag tiles are independent (v7x megacore)
            vmem_limit_bytes=32 * 1024 * 1024,
        ),
        cost_estimate=cost,
    )(text_col, starts, ends, emb_table, fc_w_t, bias)


if __name__ == "__main__":
    # Small shapes consistent with the module: vocab_size=64, embed_dim=32, num_class=4.
    V, D, C = 64, 32, 4
    B, T = 2, 8

    key = jax.random.PRNGKey(0)
    k_emb, k_w, k_txt = jax.random.split(key, 3)

    initrange = 0.25
    # bf16 storage (halved HBM/VMEM footprint); the kernel accumulates in f32.
    emb_table = jax.random.uniform(k_emb, (V, D), jnp.float32,
                                   -initrange, initrange).astype(jnp.bfloat16)
    # PyTorch fc.weight is [num_class, embed_dim]; pass it pre-transposed as [D, C].
    fc_w_t = jax.random.uniform(k_w, (D, C), jnp.float32,
                                -initrange, initrange).astype(jnp.bfloat16)
    fc_b = jnp.zeros((C,), jnp.float32)                 # fc.bias zero-initialized

    text = jax.random.randint(k_txt, (T,), 0, V, dtype=jnp.int32)
    offsets = jnp.array([0, 3], dtype=jnp.int32)        # bag0: text[0:3], bag1: text[3:8]

    out = text_sentiment_forward(text, offsets, emb_table, fc_w_t, fc_b)
    out = jax.block_until_ready(out)

    # Pure-JAX reference (same bf16 parameters, f32 math).
    emb_f32 = emb_table.astype(jnp.float32)
    w_f32 = fc_w_t.astype(jnp.float32)
    offs = [int(o) for o in offsets] + [T]
    bags = []
    for b in range(B):
        rows = emb_f32[text[offs[b]:offs[b + 1]]]
        bags.append(rows.mean(axis=0) if offs[b + 1] > offs[b]
                    else jnp.zeros((D,), jnp.float32))
    ref = jnp.stack(bags) @ w_f32 + fc_b.reshape(1, C)

    assert out.shape == (B, C)
    assert jnp.allclose(out, ref, atol=2e-2, rtol=0.0), (out, ref)
    print("KERNEL_OK")
</pallas_src>

<mosaic_0001>
module attributes {stable_mosaic.version = 11 : i64} {
  func.func @text_sentiment_kernel(%arg0: i32, %arg1: memref<8x1xi32, #tpu.memory_space<vmem>>, %arg2: memref<2x1xi32, #tpu.memory_space<vmem>>, %arg3: memref<2x1xi32, #tpu.memory_space<vmem>>, %arg4: memref<64x32xbf16, #tpu.memory_space<vmem>>, %arg5: memref<32x4xbf16, #tpu.memory_space<vmem>>, %arg6: memref<1x4xf32, #tpu.memory_space<vmem>>, %arg7: memref<2x4xf32, #tpu.memory_space<vmem>>) attributes {dimension_semantics = [#tpu.dimension_semantics<parallel>], iteration_bounds = array<i64: 1>, scalar_prefetch = 0 : i64, scratch_operands = 0 : i64, tpu.core_type = #tpu.core_type<tc>, window_params = [{pipeline_mode = #tpu.pipeline_mode<synchronous>, transform_indices = @transform_0, window_bounds = array<i64: 8, 1>}, {transform_indices = @transform_1, window_bounds = array<i64: 2, 1>}, {transform_indices = @transform_2, window_bounds = array<i64: 2, 1>}, {pipeline_mode = #tpu.pipeline_mode<synchronous>, transform_indices = @transform_3, window_bounds = array<i64: 64, 32>}, {pipeline_mode = #tpu.pipeline_mode<synchronous>, transform_indices = @transform_4, window_bounds = array<i64: 32, 4>}, {pipeline_mode = #tpu.pipeline_mode<synchronous>, transform_indices = @transform_5, window_bounds = array<i64: 1, 4>}, {transform_indices = @transform_6, window_bounds = array<i64: 2, 4>}]} {
    %c0 = arith.constant 0 : index
    %c0_0 = arith.constant 0 : index
    %0 = vector.load %arg1[%c0, %c0_0] : memref<8x1xi32, #tpu.memory_space<vmem>>, vector<8x1xi32>
    %1 = tpu.iota {dimensions = array<i32: 1>} : vector<8x64xi32>
    %2 = vector.broadcast %0 : vector<8x1xi32> to vector<8x64xi32>
    %3 = arith.cmpi eq, %1, %2 : vector<8x64xi32>
    %4 = arith.extui %3 : vector<8x64xi1> to vector<8x64xi32>
    %5 = arith.sitofp %4 : vector<8x64xi32> to vector<8x64xf32>
    %6 = arith.truncf %5 : vector<8x64xf32> to vector<8x64xbf16>
    %7 = tpu.iota {dimensions = array<i32: 1>} : vector<2x8xi32>
    %c0_1 = arith.constant 0 : index
    %c0_2 = arith.constant 0 : index
    %8 = vector.load %arg2[%c0_1, %c0_2] : memref<2x1xi32, #tpu.memory_space<vmem>>, vector<2x1xi32>
    %c0_3 = arith.constant 0 : index
    %c0_4 = arith.constant 0 : index
    %9 = vector.load %arg3[%c0_3, %c0_4] : memref<2x1xi32, #tpu.memory_space<vmem>>, vector<2x1xi32>
    %10 = vector.broadcast %8 : vector<2x1xi32> to vector<2x8xi32>
    %11 = arith.cmpi sge, %7, %10 : vector<2x8xi32>
    %12 = vector.broadcast %9 : vector<2x1xi32> to vector<2x8xi32>
    %13 = arith.cmpi slt, %7, %12 : vector<2x8xi32>
    %14 = arith.andi %11, %13 : vector<2x8xi1>
    %15 = arith.extui %14 : vector<2x8xi1> to vector<2x8xi32>
    %16 = arith.sitofp %15 : vector<2x8xi32> to vector<2x8xf32>
    %17 = arith.truncf %16 : vector<2x8xf32> to vector<2x8xbf16>
    %cst = arith.constant dense<0.000000e+00> : vector<2x64xf32>
    %18 = tpu.matmul %17, %6, %cst {dimension_numbers = #tpu.dot_dimension_numbers<[1], [0], [0], [1], [0, 0, 1, 1], [], []>} : vector<2x8xbf16>, vector<8x64xbf16>, vector<2x64xf32> -> vector<2x64xf32>
    %19 = arith.truncf %18 : vector<2x64xf32> to vector<2x64xbf16>
    %c0_5 = arith.constant 0 : index
    %c0_6 = arith.constant 0 : index
    %20 = vector.load %arg4[%c0_5, %c0_6] : memref<64x32xbf16, #tpu.memory_space<vmem>>, vector<64x32xbf16>
    %cst_7 = arith.constant dense<0.000000e+00> : vector<2x32xf32>
    %21 = tpu.matmul %19, %20, %cst_7 {dimension_numbers = #tpu.dot_dimension_numbers<[1], [0], [0], [1], [0, 0, 1, 1], [], []>} : vector<2x64xbf16>, vector<64x32xbf16>, vector<2x32xf32> -> vector<2x32xf32>
    %22 = arith.subi %9, %8 : vector<2x1xi32>
    %23 = arith.sitofp %22 : vector<2x1xi32> to vector<2x1xf32>
    %cst_8 = arith.constant 0.000000e+00 : f32
    %24 = vector.broadcast %cst_8 : f32 to vector<2x1xf32>
    %25 = arith.cmpf ogt, %23, %24 : vector<2x1xf32>
    %cst_9 = arith.constant 1.000000e+00 : f32
    %26 = vector.broadcast %cst_9 : f32 to vector<2x1xf32>
    %27 = arith.divf %26, %23 : vector<2x1xf32>
    %cst_10 = arith.constant 0.000000e+00 : f32
    %28 = vector.broadcast %cst_10 : f32 to vector<2x1xf32>
    %29 = arith.select %25, %27, %28 : vector<2x1xi1>, vector<2x1xf32>
    %30 = vector.broadcast %29 : vector<2x1xf32> to vector<2x32xf32>
    %31 = arith.mulf %21, %30 : vector<2x32xf32>
    %32 = arith.truncf %31 : vector<2x32xf32> to vector<2x32xbf16>
    %c0_11 = arith.constant 0 : index
    %c0_12 = arith.constant 0 : index
    %33 = vector.load %arg5[%c0_11, %c0_12] : memref<32x4xbf16, #tpu.memory_space<vmem>>, vector<32x4xbf16>
    %cst_13 = arith.constant dense<0.000000e+00> : vector<2x4xf32>
    %34 = tpu.matmul %32, %33, %cst_13 {dimension_numbers = #tpu.dot_dimension_numbers<[1], [0], [0], [1], [0, 0, 1, 1], [], []>} : vector<2x32xbf16>, vector<32x4xbf16>, vector<2x4xf32> -> vector<2x4xf32>
    %c0_14 = arith.constant 0 : index
    %c0_15 = arith.constant 0 : index
    %35 = vector.load %arg6[%c0_14, %c0_15] : memref<1x4xf32, #tpu.memory_space<vmem>>, vector<1x4xf32>
    %36 = vector.broadcast %35 : vector<1x4xf32> to vector<2x4xf32>
    %37 = arith.addf %34, %36 : vector<2x4xf32>
    %c0_16 = arith.constant 0 : index
    %c0_17 = arith.constant 0 : index
    %38 = vector.load %arg7[%c0_16, %c0_17] : memref<2x4xf32, #tpu.memory_space<vmem>>, vector<2x4xf32>
    tpu.vector_store %arg7[%c0_16, %c0_17], %37 {strides = array<i32>} : memref<2x4xf32, #tpu.memory_space<vmem>>, vector<2x4xf32>,
    return
  }
  func.func @transform_0(%arg0: i32) -> (i32, i32) {
    %c0_i32 = arith.constant 0 : i32
    %c0_i32_0 = arith.constant 0 : i32
    %c0_i32_1 = arith.constant 0 : i32
    return %c0_i32, %c0_i32_0 : i32, i32
  }
  func.func @transform_1(%arg0: i32) -> (i32, i32) {
    %c0_i32 = arith.constant 0 : i32
    %c0_i32_0 = arith.constant 0 : i32
    return %arg0, %c0_i32 : i32, i32
  }
  func.func @transform_2(%arg0: i32) -> (i32, i32) {
    %c0_i32 = arith.constant 0 : i32
    %c0_i32_0 = arith.constant 0 : i32
    return %arg0, %c0_i32 : i32, i32
  }
  func.func @transform_3(%arg0: i32) -> (i32, i32) {
    %c0_i32 = arith.constant 0 : i32
    %c0_i32_0 = arith.constant 0 : i32
    %c0_i32_1 = arith.constant 0 : i32
    return %c0_i32, %c0_i32_0 : i32, i32
  }
  func.func @transform_4(%arg0: i32) -> (i32, i32) {
    %c0_i32 = arith.constant 0 : i32
    %c0_i32_0 = arith.constant 0 : i32
    %c0_i32_1 = arith.constant 0 : i32
    return %c0_i32, %c0_i32_0 : i32, i32
  }
  func.func @transform_5(%arg0: i32) -> (i32, i32) {
    %c0_i32 = arith.constant 0 : i32
    %c0_i32_0 = arith.constant 0 : i32
    %c0_i32_1 = arith.constant 0 : i32
    return %c0_i32, %c0_i32_0 : i32, i32
  }
  func.func @transform_6(%arg0: i32) -> (i32, i32) {
    %c0_i32 = arith.constant 0 : i32
    %c0_i32_0 = arith.constant 0 : i32
    return %arg0, %c0_i32 : i32, i32
  }
}

</mosaic_0001>

<llo_original>
// kernel: tpu_custom_call.1
$region0: #{tpu_custom_call.1}
  #allocation0 [shape = 'u32[]', space=smem, size = 0x4, offset = 0x4, fixed_abs, tag = 'smem constant byte address 0x4 - core index']
  #allocation1 [shape = 'u32[144,128]{1,0:T(1,128)}', space=vmem, size = 0x12000, scoped, tag = 'internal scratch']
  %s0 = inlined_call_operand.vmem [shape: s32[8,1], index: 0, kind: input, shape index: {}]
  %s1 = inlined_call_operand.vmem [shape: s32[2,1], index: 1, kind: input, shape index: {}]
  %s2 = inlined_call_operand.vmem [shape: s32[2,1], index: 2, kind: input, shape index: {}]
  %s3 = inlined_call_operand.vmem [shape: bf16[64,32], index: 3, kind: input, shape index: {}]
  %s4 = inlined_call_operand.vmem [shape: bf16[32,4], index: 4, kind: input, shape index: {}]
  %s5 = inlined_call_operand.vmem [shape: f32[1,4], index: 5, kind: input, shape index: {}]
  %s6 = inlined_call_operand.hbm [shape: f32[2,4], index: 6, kind: output, shape index: {}]
  %s7 = sld [smem:[#allocation0]]
  $region34: #{tpu_custom_call.1} parent=0
    _
  %s9 = ssub.s32 1, %s7
  %s10 = scalar_select 0, %s9, %s7
  $region1: #{tpu_custom_call.1} parent=0
    #allocation2 [shape = 'u8[1024]{0}', space=vmem, size = 0x400, scoped, tag = 'output window, operand 0, single buffered']
    #allocation3 [shape = 's32[1]{0}', space=sflag, size = 0x4, scoped, tag = 'scoped memory for tpu_custom_call.1']
    %11 = vsyncpa [#allocation3], 0
    // Predicated region
    $region2: #{tpu_custom_call.1} parent=1 // pred_check
      _
    $region3: #{tpu_custom_call.1} parent=1 // pred_check_branch
      %13 = sbr.rel (0) target = $region5
    $region4: #{tpu_custom_call.1} parent=1 // pred_region
      _
    $region5: #{tpu_custom_call.1} parent=1 // pred_fallthru
      _
    // Predicated region
    $region6: #{tpu_custom_call.1} parent=1 // pred_check
      _
    $region7: #{tpu_custom_call.1} parent=1 // pred_check_branch
      %15 = sbr.rel (0) target = $region9
    $region8: #{tpu_custom_call.1} parent=1 // pred_region
      _
    $region9: #{tpu_custom_call.1} parent=1 // pred_fallthru
      _
    // Predicated region
    $region10: #{tpu_custom_call.1} parent=1 // pred_check
      _
    $region11: #{tpu_custom_call.1} parent=1 // pred_check_branch
      %17 = sbr.rel (0) target = $region13
    $region12: #{tpu_custom_call.1} parent=1 // pred_region
      _
    $region13: #{tpu_custom_call.1} parent=1 // pred_fallthru
      _
    // Predicated region
    $region14: #{tpu_custom_call.1} parent=1 // pred_check
      _
    $region15: #{tpu_custom_call.1} parent=1 // pred_check_branch
      %19 = sbr.rel (0) target = $region17
    $region16: #{tpu_custom_call.1} parent=1 // pred_region
      _
    $region17: #{tpu_custom_call.1} parent=1 // pred_fallthru
      _
    // Predicated region
    $region18: #{tpu_custom_call.1} parent=1 // pred_check
      _
    $region19: #{tpu_custom_call.1} parent=1 // pred_check_branch
      %21 = sbr.rel (0) target = $region21
    $region20: #{tpu_custom_call.1} parent=1 // pred_region
      _
    $region21: #{tpu_custom_call.1} parent=1 // pred_fallthru
      _
    // Predicated region
    $region22: #{tpu_custom_call.1} parent=1 // pred_check
      _
    $region23: #{tpu_custom_call.1} parent=1 // pred_check_branch
      %23 = sbr.rel (0) target = $region25
    $region24: #{tpu_custom_call.1} parent=1 // pred_region
      _
    $region25: #{tpu_custom_call.1} parent=1 // pred_fallthru
      _
    %v25 = vld [vmem:[%s0] sm:$0xff]
    %v26 = vlaneseq
    %v27 = vand.u32 %v26, 127
    %28 = vset.pattern.permute.xlu0 0
    %29 = vperm.xlu0 %28, %v25
    %v30 = vpop.permute.xlu0 %29
    %vm31 = vcmp.eq.s32.totalorder %v27, %v30
    %v32 = vsel %vm31, 1, 0
    %v33 = vcvt.s32.f32 %v32
    %v34 = vpack.c.bf16 %v33, %v33
    %v35 = vld [vmem:[%s1] sm:$0x3]
    %v36 = vld [vmem:[%s2] sm:$0x3]
    %37 = vset.pattern.permute.xlu0 0
    %38 = vperm.xlu0 %37, %v35
    %v39 = vpop.permute.xlu0 %38
    %vm40 = vcmp.ge.s32.totalorder %v27, %v39
    %41 = vset.pattern.permute.xlu0 0
    %42 = vperm.xlu0 %41, %v36
    %v43 = vpop.permute.xlu0 %42
    %vm44 = vcmp.lt.s32.totalorder %v27, %v43
    %vm45 = vmand %vm40, %vm44
    %v46 = vsel %vm45, 1, 0
    %v47 = vcvt.s32.f32 %v46
    %v48 = vpack.c.bf16 %v47, %v47
    %vm49 = vcmask 64512
    %v51 = vsel %vm49, %v48, 0
    %vm53 = vcmask 1043456
    %v55 = vsel %vm53, %v34, 0
    %57 = vmatprep.subr.bf16.mxu0 0
    %58 = vmatpush1.bf16.msra.mxu0 0
    %59 = vmatprep.subr.bf16.mxu0 0
    %60 = vmatpush1.bf16.msra.mxu0 0
    %61 = vmatprep.subr.bf16.mxu0 0
    %62 = vmatpush1.bf16.msra.mxu0 0
    %63 = vmatprep.subr.bf16.mxu0 0
    %64 = vmatpush1.bf16.msra.mxu0 0
    %65 = vmatprep.subr.bf16.mxu0 0
    %66 = vmatpush1.bf16.msra.mxu0 0
    %67 = vmatprep.subr.bf16.mxu0 0
    %68 = vmatpush1.bf16.msra.mxu0 0
    %69 = vmatprep.subr.bf16.mxu0 0
    %70 = vmatpush1.bf16.msra.mxu0 0
    %71 = vmatprep.subr.bf16.mxu0 0
    %72 = vmatpush1.bf16.msra.mxu0 %v55
    %73 = vmatprep.subr.bf16.mxu0 0
    %74 = vmatpush2.bf16.msra.mxu0 0
    %75 = vmatprep.subr.bf16.mxu0 0
    %76 = vmatpush2.bf16.msra.mxu0 0
    %77 = vmatprep.subr.bf16.mxu0 0
    %78 = vmatpush2.bf16.msra.mxu0 0
    %79 = vmatprep.subr.bf16.mxu0 0
    %80 = vmatpush2.bf16.msra.mxu0 0
    %81 = vmatprep.subr.bf16.mxu0 0
    %82 = vmatpush2.bf16.msra.mxu0 0
    %83 = vmatprep.subr.bf16.mxu0 0
    %84 = vmatpush2.bf16.msra.mxu0 0
    %85 = vmatprep.subr.bf16.mxu0 0
    %86 = vmatpush2.bf16.msra.mxu0 0
    %87 = vmatprep.subr.bf16.mxu0 0
    %88 = vmatpush2.bf16.msra.mxu0 0
    %89 = vmatprep.mubr.bf16.mxu0 0
    %90 = vmatmul.mubr.bf16.gmra.mxu0 %v51
    %v91 = vpop.f32.mrf.mxu0
    %v92 = vadd.f32 0.0, %v91
    %v93 = vpop.f32.mrf.mxu0
    %v94 = vpop.f32.mrf.mxu0
    %v95 = vpop.f32.mrf.mxu0
    %96 = vdwg.mxu0
    %v97 = vpack.c.bf16 %v92, %v92
    %v98 = vld [vmem:[%s3] sm:$0xf]
    %v99 = vld [vmem:[%s3 + $0x4] sm:$0xf]
    %v100 = vld [vmem:[%s3 + $0x8] sm:$0xf]
    %v101 = vld [vmem:[%s3 + $0xc] sm:$0xf]
    %v102 = vld [vmem:[%s3 + $0x10] sm:$0xf]
    %v103 = vld [vmem:[%s3 + $0x14] sm:$0xf]
    %v104 = vld [vmem:[%s3 + $0x18] sm:$0xf]
    %v105 = vld [vmem:[%s3 + $0x1c] sm:$0xf]
    %v114 = vunpack.c.l.b16 %v98
    %v115 = vunpack.c.l.b16 %v99
    %v116 = vunpack.c.l.b16 %v100
    %v117 = vunpack.c.l.b16 %v101
    %v118 = vunpack.c.l.b16 %v102
    %v119 = vunpack.c.l.b16 %v103
    %v120 = vunpack.c.l.b16 %v104
    %v121 = vunpack.c.l.b16 %v105
    %v122 = vpack.c.b16 %v115, %v114
    %v123 = vpack.c.b16 %v117, %v116
    %v124 = vpack.c.b16 %v119, %v118
    %v125 = vpack.c.b16 %v121, %v120
    %vm130 = vcmask 523264
    %v132 = vsel %vm130, %v97, 0
    %134 = vmatprep.subr.bf16.mxu0 0
    %135 = vmatpush1.bf16.msra.mxu0 0
    %136 = vmatprep.subr.bf16.mxu0 0
    %137 = vmatpush1.bf16.msra.mxu0 0
    %138 = vmatprep.subr.bf16.mxu0 0
    %139 = vmatpush1.bf16.msra.mxu0 0
    %140 = vmatprep.subr.bf16.mxu0 0
    %141 = vmatpush1.bf16.msra.mxu0 0
    %142 = vmatprep.subr.bf16.mxu0 0
    %143 = vmatpush1.bf16.msra.mxu0 %v125
    %144 = vmatprep.subr.bf16.mxu0 0
    %145 = vmatpush1.bf16.msra.mxu0 %v124
    %146 = vmatprep.subr.bf16.mxu0 0
    %147 = vmatpush1.bf16.msra.mxu0 %v123
    %148 = vmatprep.subr.bf16.mxu0 0
    %149 = vmatpush1.bf16.msra.mxu0 %v122
    %150 = vmatprep.subr.bf16.mxu0 0
    %151 = vmatpush2.bf16.msra.mxu0 0
    %152 = vmatprep.subr.bf16.mxu0 0
    %153 = vmatpush2.bf16.msra.mxu0 0
    %154 = vmatprep.subr.bf16.mxu0 0
    %155 = vmatpush2.bf16.msra.mxu0 0
    %156 = vmatprep.subr.bf16.mxu0 0
    %157 = vmatpush2.bf16.msra.mxu0 0
    %158 = vmatprep.subr.bf16.mxu0 0
    %159 = vmatpush2.bf16.msra.mxu0 0
    %160 = vmatprep.subr.bf16.mxu0 0
    %161 = vmatpush2.bf16.msra.mxu0 0
    %162 = vmatprep.subr.bf16.mxu0 0
    %163 = vmatpush2.bf16.msra.mxu0 0
    %164 = vmatprep.subr.bf16.mxu0 0
    %165 = vmatpush2.bf16.msra.mxu0 0
    %166 = vmatprep.mubr.bf16.mxu0 0
    %167 = vmatmul.mubr.bf16.gmra.mxu0 %v132
    %v168 = vpop.f32.mrf.mxu0
    %v169 = vadd.f32 0.0, %v168
    %v170 = vpop.f32.mrf.mxu0
    %v171 = vpop.f32.mrf.mxu0
    %v172 = vpop.f32.mrf.mxu0
    %173 = vdwg.mxu0
    %v174 = vsub.s32 %v36, %v35
    %v175 = vcvt.s32.f32 %v174
    %vm176 = vcmp.gt.f32.partialorder %v175, 0.0
    %v177 = vrcp.pop %v175
    %v178 = vmul.f32 1.0, %v177
    %v179 = vsel %vm176, %v178, 0.0
    %181 = vset.pattern.permute.xlu0 0
    %182 = vperm.xlu0 %181, %v179
    %v183 = vpop.permute.xlu0 %182
    %v185 = vmul.f32 %v169, %v183
    %v186 = vpack.c.bf16 %v185, %v185
    %v187 = vld [vmem:[%s4] sm:$0xf]
    %v188 = vld [vmem:[%s4 + $0x4] sm:$0xf]
    %v189 = vld [vmem:[%s4 + $0x8] sm:$0xf]
    %v190 = vld [vmem:[%s4 + $0xc] sm:$0xf]
    %v191 = vld [vmem:[%s5] sm:$0x1]
    %v193 = vlaneseq
    %v194 = vshrl.u32 %v193, 7
    %v195 = vsub.s32 0, %v194
    %v196 = vrot.slane %v191, %v195
    %v202 = vunpack.c.l.b16 %v187
    %v203 = vunpack.c.l.b16 %v188
    %v204 = vunpack.c.l.b16 %v189
    %v205 = vunpack.c.l.b16 %v190
    %v206 = vpack.c.b16 %v203, %v202
    %v207 = vpack.c.b16 %v205, %v204
    %vm210 = vcmask 261120
    %v212 = vsel %vm210, %v186, 0
    %214 = vmatprep.subr.bf16.mxu0 0
    %215 = vmatpush1.bf16.msra.mxu0 0
    %216 = vmatprep.subr.bf16.mxu0 0
    %217 = vmatpush1.bf16.msra.mxu0 0
    %218 = vmatprep.subr.bf16.mxu0 0
    %219 = vmatpush1.bf16.msra.mxu0 0
    %220 = vmatprep.subr.bf16.mxu0 0
    %221 = vmatpush1.bf16.msra.mxu0 0
    %222 = vmatprep.subr.bf16.mxu0 0
    %223 = vmatpush1.bf16.msra.mxu0 0
    %224 = vmatprep.subr.bf16.mxu0 0
    %225 = vmatpush1.bf16.msra.mxu0 0
    %226 = vmatprep.subr.bf16.mxu0 0
    %227 = vmatpush1.bf16.msra.mxu0 %v207
    %228 = vmatprep.subr.bf16.mxu0 0
    %229 = vmatpush1.bf16.msra.mxu0 %v206
    %230 = vmatprep.subr.bf16.mxu0 0
    %231 = vmatpush2.bf16.msra.mxu0 0
    %232 = vmatprep.subr.bf16.mxu0 0
    %233 = vmatpush2.bf16.msra.mxu0 0
    %234 = vmatprep.subr.bf16.mxu0 0
    %235 = vmatpush2.bf16.msra.mxu0 0
    %236 = vmatprep.subr.bf16.mxu0 0
    %237 = vmatpush2.bf16.msra.mxu0 0
    %238 = vmatprep.subr.bf16.mxu0 0
    %239 = vmatpush2.bf16.msra.mxu0 0
    %240 = vmatprep.subr.bf16.mxu0 0
    %241 = vmatpush2.bf16.msra.mxu0 0
    %242 = vmatprep.subr.bf16.mxu0 0
    %243 = vmatpush2.bf16.msra.mxu0 0
    %244 = vmatprep.subr.bf16.mxu0 0
    %245 = vmatpush2.bf16.msra.mxu0 0
    %246 = vmatprep.mubr.bf16.mxu0 0
    %247 = vmatmul.mubr.bf16.gmra.mxu0 %v212
    %v248 = vpop.f32.mrf.mxu0
    %v249 = vadd.f32 %v196, %v248
    %v250 = vpop.f32.mrf.mxu0
    %v251 = vpop.f32.mrf.mxu0
    %v252 = vpop.f32.mrf.mxu0
    %253 = vdwg.mxu0
    %vm254 = vcmask 25600
    %255 = vst.msk [vmem:[#allocation2] sm:$0x3] %vm254, %v249
    // Predicated region
    $region26: #{tpu_custom_call.1} parent=1 // pred_check
      _
    $region27: #{tpu_custom_call.1} parent=1 // pred_check_branch
      %257 = sbr.rel (0) target = $region29
    $region28: #{tpu_custom_call.1} parent=1 // pred_region
      %s259 = ssub.s32 32, 32
      %260 = vsyncadd [#allocation3], %s259
      %s262 = sshll.u32 [#allocation2], 4
      %s263 = int_to_ptr.vmem [resolvable:$true] %s262
      %265 = dma.vmem_to_hbm [thread:$0]  %s263, 32, %s6, [#allocation3]
    $region29: #{tpu_custom_call.1} parent=1 // pred_fallthru
      _
    // Predicated region
    $region30: #{tpu_custom_call.1} parent=1 // pred_check
      _
    $region31: #{tpu_custom_call.1} parent=1 // pred_check_branch
      %267 = sbr.rel (0) target = $region33
    $region32: #{tpu_custom_call.1} parent=1 // pred_region
      %268 = dma.done [#allocation3], 32
    $region33: #{tpu_custom_call.1} parent=1 // pred_fallthru
      _
    %269 = vsyncpa [#allocation3], 1

</llo_original>
